<compile_context>
chip_gen: v5e
topology: v5e:2x2
jax: 0.10.0
libtpu: 0.0.40
codegen_flags: <defaults>
</compile_context>

<pallas_src>
import functools

import jax
import jax.numpy as jnp
from jax.experimental import pallas as pl
from jax.experimental.pallas import tpu as pltpu


# ---------------------------------------------------------------------------
# Geometry
# ---------------------------------------------------------------------------
LAYER_DIMS = [(2, 6), (6, 4), (4, 2)]          # (fan_in, fan_out) per linear layer
IN_FEATURES = LAYER_DIMS[0][0]
OUT_FEATURES = LAYER_DIMS[-1][1]
N_PARAMS = sum(n_out * (n_in + 1) for n_in, n_out in LAYER_DIMS)   # 56 scalars

LANES = 128       # batch samples per vreg row (lane axis)
SUB = 8           # sublane granularity
R_MAX = 256       # sublane rows per grid step -> 256*128 = 32768 samples / step
# NOTE(v6e/v7x): activations could be bf16 in/out (f32 accumulate) to halve HBM bytes;
# kept f32 so the identical kernel is also optimal on v5e (no bf16 VPU).


# ---------------------------------------------------------------------------
# Kernel
# ---------------------------------------------------------------------------
def mlp_kernel(p_ref, x_ref, o_ref):
    """p_ref: (N_PARAMS,) f32 in SMEM.   x_ref: (2, R, 128).   o_ref: (2, R, 128).

    Feature-major activations: each feature is a dense (R, 128) slab (batch on the
    128-lane axis, R a multiple of 8 sublanes).  Each layer output unit is

        relu( sum_k  w[k,j] * h[k]  +  b[j] )

    with w[k,j], b[j] read as scalars from SMEM -> pure vector-scalar VPU FMAs,
    no cross-lane broadcasts, no MXU.
    """
    h = [x_ref[k] for k in range(IN_FEATURES)]          # list of (R, 128) slabs
    idx = 0
    for (n_in, n_out) in LAYER_DIMS:
        nxt = []
        for _ in range(n_out):
            acc = h[0] * p_ref[idx]
            for k in range(1, n_in):
                acc = acc + h[k] * p_ref[idx + k]
            acc = acc + p_ref[idx + n_in]               # bias (scalar add)
            nxt.append(jnp.maximum(acc, 0.0))           # ReLU after every layer
            idx += n_in + 1
        h = nxt
    for j in range(OUT_FEATURES):
        o_ref[j] = h[j].astype(o_ref.dtype)             # lane-dense stores


# ---------------------------------------------------------------------------
# Parameter packing (done ONCE, outside the hot path)
# ---------------------------------------------------------------------------
def pack_params_flat(params):
    """Flatten w1,b1,w2,b2,w3,b3 into one (N_PARAMS,) f32 vector.

    Layout: for each layer, for each output unit j: [w[0,j], ..., w[n_in-1,j], b[j]].
    """
    parts = []
    for i, (n_in, n_out) in enumerate(LAYER_DIMS, start=1):
        w = jnp.asarray(params[f"w{i}"], jnp.float32)                # (n_in, n_out)
        b = jnp.asarray(params[f"b{i}"], jnp.float32).reshape(n_out)
        for j in range(n_out):
            parts.append(w[:, j])
            parts.append(b[j : j + 1])
    flat = jnp.concatenate(parts)
    assert flat.shape == (N_PARAMS,), flat.shape
    return flat


# ---------------------------------------------------------------------------
# Pallas call + wrapper
# ---------------------------------------------------------------------------
def _geometry(batch):
    """Padded sublane-row count and rows-per-grid-step for a given batch size."""
    rows = pl.cdiv(batch, LANES)                    # rows of 128 samples
    rows = max(SUB, pl.cdiv(rows, SUB) * SUB)       # multiple of 8 sublanes
    r = min(R_MAX, rows)                            # rows per grid step
    rows = pl.cdiv(rows, r) * r                     # multiple of the step size
    return rows, r


def net_apply(p_flat, xf):
    """Core Pallas call.  xf: (IN_FEATURES, rows, 128) feature-major, batch on lanes."""
    _, rows, lanes = xf.shape
    assert lanes == LANES
    r = min(R_MAX, rows)
    assert rows % r == 0 and r % SUB == 0
    grid = (rows // r,)
    return pl.pallas_call(
        mlp_kernel,
        out_shape=jax.ShapeDtypeStruct((OUT_FEATURES, rows, LANES), jnp.float32),
        grid=grid,
        in_specs=[
            # 56 weight/bias scalars -> SMEM (scalar path, no lane broadcasts).
            pl.BlockSpec(memory_space=pltpu.MemorySpace.SMEM),
            # Streaming input block: fully (8,128)-dense, double-buffered by Pallas.
            pl.BlockSpec((IN_FEATURES, r, LANES), lambda i: (0, i, 0)),
        ],
        out_specs=pl.BlockSpec((OUT_FEATURES, r, LANES), lambda i: (0, i, 0)),
        compiler_params=pltpu.CompilerParams(
            dimension_semantics=("parallel",),      # shards across both TCs on v7x
        ),
    )(p_flat, xf)


@jax.jit
def net_forward(x, p_flat):
    """PyTorch-contract forward: x (B, 2) float32 -> (B, 2) float32.

    The transpose/pad/reshape layout passes are fused inside this jit; callers that
    already hold feature-major (2, rows, 128) data should call `net_apply` directly
    and skip them (the kernel itself moves only ~16 B/sample).
    """
    B = x.shape[0]
    rows, _ = _geometry(B)
    xt = jnp.asarray(x, jnp.float32).T                          # (2, B)
    xt = jnp.pad(xt, ((0, 0), (0, rows * LANES - B)))           # (2, rows*128)
    xf = xt.reshape(IN_FEATURES, rows, LANES)
    out = net_apply(p_flat, xf)                                 # (2, rows, 128)
    return out.reshape(OUT_FEATURES, rows * LANES)[:, :B].T     # (B, 2)


# ---------------------------------------------------------------------------
# Init + reference
# ---------------------------------------------------------------------------
def init_params(key):
    """nn.Linear-style init: uniform(-1/sqrt(fan_in), +1/sqrt(fan_in))."""
    params = {}
    for i, (fan_in, fan_out) in enumerate(LAYER_DIMS, start=1):
        key, kw, kb = jax.random.split(key, 3)
        bound = 1.0 / jnp.sqrt(float(fan_in))
        # stored as (in, out): forward is x @ W + b (== PyTorch x @ W.T + b)
        params[f"w{i}"] = jax.random.uniform(
            kw, (fan_in, fan_out), jnp.float32, minval=-bound, maxval=bound)
        params[f"b{i}"] = jax.random.uniform(
            kb, (fan_out,), jnp.float32, minval=-bound, maxval=bound)
    return params


def reference_forward(x, params):
    h = jnp.maximum(x @ params["w1"] + params["b1"], 0.0)
    h = jnp.maximum(h @ params["w2"] + params["b2"], 0.0)
    h = jnp.maximum(h @ params["w3"] + params["b3"], 0.0)
    return h


# ---------------------------------------------------------------------------
# Demo / self-test
# ---------------------------------------------------------------------------
if __name__ == "__main__":
    key = jax.random.PRNGKey(0)
    params = init_params(key)
    p_flat = pack_params_flat(params)            # packed ONCE, outside the hot path

    # XOR-style input from the original script: 4 samples, 2 features each.
    x_small = jnp.array(
        [[0.0, 0.0], [0.0, 1.0], [1.0, 0.0], [1.0, 1.0]], dtype=jnp.float32)
    out_small = net_forward(x_small, p_flat)
    jax.block_until_ready(out_small)
    ref_small = reference_forward(x_small, params)
    assert out_small.shape == (4, 2), out_small.shape
    assert jnp.allclose(out_small, ref_small, atol=1e-5, rtol=1e-5)

    # Ragged batch (exercises pad / slice path, single grid step).
    key, k1 = jax.random.split(key)
    x_med = jax.random.normal(k1, (300, 2), jnp.float32)
    out_med = net_forward(x_med, p_flat)
    jax.block_until_ready(out_med)
    assert out_med.shape == (300, 2), out_med.shape
    assert jnp.allclose(out_med, reference_forward(x_med, params), atol=1e-4, rtol=1e-4)

    # Multi-tile batch: 2 grid steps of (2, 256, 128) -> exercises the "parallel" grid.
    key, k2 = jax.random.split(key)
    x_big = jax.random.normal(k2, (33000, 2), jnp.float32)
    out_big = net_forward(x_big, p_flat)
    jax.block_until_ready(out_big)
    assert out_big.shape == (33000, 2), out_big.shape
    assert jnp.allclose(out_big, reference_forward(x_big, params), atol=1e-4, rtol=1e-4)

    print("KERNEL_OK")
</pallas_src>

<mosaic_0001>
module attributes {stable_mosaic.version = 11 : i64} {
  func.func @mlp_kernel(%arg0: i32, %arg1: memref<56xf32, #tpu.memory_space<smem>>, %arg2: memref<2x8x128xf32, #tpu.memory_space<vmem>>, %arg3: memref<2x8x128xf32, #tpu.memory_space<vmem>>) attributes {dimension_semantics = [#tpu.dimension_semantics<parallel>], iteration_bounds = array<i64: 1>, scalar_prefetch = 0 : i64, scratch_operands = 0 : i64, tpu.core_type = #tpu.core_type<tc>, window_params = [{transform_indices = @transform_0, window_bounds = array<i64: 56>}, {transform_indices = @transform_1, window_bounds = array<i64: 2, 8, 128>}, {transform_indices = @transform_2, window_bounds = array<i64: 2, 8, 128>}]} {
    %c0 = arith.constant 0 : index
    %c0_0 = arith.constant 0 : index
    %c0_1 = arith.constant 0 : index
    %0 = vector.load %arg2[%c0, %c0_0, %c0_1] : memref<2x8x128xf32, #tpu.memory_space<vmem>>, vector<1x8x128xf32>
    %1 = vector.shape_cast %0 : vector<1x8x128xf32> to vector<8x128xf32>
    %c1 = arith.constant 1 : index
    %c0_2 = arith.constant 0 : index
    %c0_3 = arith.constant 0 : index
    %2 = vector.load %arg2[%c1, %c0_2, %c0_3] : memref<2x8x128xf32, #tpu.memory_space<vmem>>, vector<1x8x128xf32>
    %3 = vector.shape_cast %2 : vector<1x8x128xf32> to vector<8x128xf32>
    %c0_4 = arith.constant 0 : index
    %4 = memref.load %arg1[%c0_4] : memref<56xf32, #tpu.memory_space<smem>>
    %5 = vector.broadcast %4 : f32 to vector<8x128xf32>
    %6 = arith.mulf %1, %5 : vector<8x128xf32>
    %c1_5 = arith.constant 1 : index
    %7 = memref.load %arg1[%c1_5] : memref<56xf32, #tpu.memory_space<smem>>
    %8 = vector.broadcast %7 : f32 to vector<8x128xf32>
    %9 = arith.mulf %3, %8 : vector<8x128xf32>
    %10 = arith.addf %6, %9 : vector<8x128xf32>
    %c2 = arith.constant 2 : index
    %11 = memref.load %arg1[%c2] : memref<56xf32, #tpu.memory_space<smem>>
    %12 = vector.broadcast %11 : f32 to vector<8x128xf32>
    %13 = arith.addf %10, %12 : vector<8x128xf32>
    %cst = arith.constant 0.000000e+00 : f32
    %14 = vector.broadcast %cst : f32 to vector<8x128xf32>
    %15 = arith.maximumf %13, %14 : vector<8x128xf32>
    %c3 = arith.constant 3 : index
    %16 = memref.load %arg1[%c3] : memref<56xf32, #tpu.memory_space<smem>>
    %17 = vector.broadcast %16 : f32 to vector<8x128xf32>
    %18 = arith.mulf %1, %17 : vector<8x128xf32>
    %c4 = arith.constant 4 : index
    %19 = memref.load %arg1[%c4] : memref<56xf32, #tpu.memory_space<smem>>
    %20 = vector.broadcast %19 : f32 to vector<8x128xf32>
    %21 = arith.mulf %3, %20 : vector<8x128xf32>
    %22 = arith.addf %18, %21 : vector<8x128xf32>
    %c5 = arith.constant 5 : index
    %23 = memref.load %arg1[%c5] : memref<56xf32, #tpu.memory_space<smem>>
    %24 = vector.broadcast %23 : f32 to vector<8x128xf32>
    %25 = arith.addf %22, %24 : vector<8x128xf32>
    %cst_6 = arith.constant 0.000000e+00 : f32
    %26 = vector.broadcast %cst_6 : f32 to vector<8x128xf32>
    %27 = arith.maximumf %25, %26 : vector<8x128xf32>
    %c6 = arith.constant 6 : index
    %28 = memref.load %arg1[%c6] : memref<56xf32, #tpu.memory_space<smem>>
    %29 = vector.broadcast %28 : f32 to vector<8x128xf32>
    %30 = arith.mulf %1, %29 : vector<8x128xf32>
    %c7 = arith.constant 7 : index
    %31 = memref.load %arg1[%c7] : memref<56xf32, #tpu.memory_space<smem>>
    %32 = vector.broadcast %31 : f32 to vector<8x128xf32>
    %33 = arith.mulf %3, %32 : vector<8x128xf32>
    %34 = arith.addf %30, %33 : vector<8x128xf32>
    %c8 = arith.constant 8 : index
    %35 = memref.load %arg1[%c8] : memref<56xf32, #tpu.memory_space<smem>>
    %36 = vector.broadcast %35 : f32 to vector<8x128xf32>
    %37 = arith.addf %34, %36 : vector<8x128xf32>
    %cst_7 = arith.constant 0.000000e+00 : f32
    %38 = vector.broadcast %cst_7 : f32 to vector<8x128xf32>
    %39 = arith.maximumf %37, %38 : vector<8x128xf32>
    %c9 = arith.constant 9 : index
    %40 = memref.load %arg1[%c9] : memref<56xf32, #tpu.memory_space<smem>>
    %41 = vector.broadcast %40 : f32 to vector<8x128xf32>
    %42 = arith.mulf %1, %41 : vector<8x128xf32>
    %c10 = arith.constant 10 : index
    %43 = memref.load %arg1[%c10] : memref<56xf32, #tpu.memory_space<smem>>
    %44 = vector.broadcast %43 : f32 to vector<8x128xf32>
    %45 = arith.mulf %3, %44 : vector<8x128xf32>
    %46 = arith.addf %42, %45 : vector<8x128xf32>
    %c11 = arith.constant 11 : index
    %47 = memref.load %arg1[%c11] : memref<56xf32, #tpu.memory_space<smem>>
    %48 = vector.broadcast %47 : f32 to vector<8x128xf32>
    %49 = arith.addf %46, %48 : vector<8x128xf32>
    %cst_8 = arith.constant 0.000000e+00 : f32
    %50 = vector.broadcast %cst_8 : f32 to vector<8x128xf32>
    %51 = arith.maximumf %49, %50 : vector<8x128xf32>
    %c12 = arith.constant 12 : index
    %52 = memref.load %arg1[%c12] : memref<56xf32, #tpu.memory_space<smem>>
    %53 = vector.broadcast %52 : f32 to vector<8x128xf32>
    %54 = arith.mulf %1, %53 : vector<8x128xf32>
    %c13 = arith.constant 13 : index
    %55 = memref.load %arg1[%c13] : memref<56xf32, #tpu.memory_space<smem>>
    %56 = vector.broadcast %55 : f32 to vector<8x128xf32>
    %57 = arith.mulf %3, %56 : vector<8x128xf32>
    %58 = arith.addf %54, %57 : vector<8x128xf32>
    %c14 = arith.constant 14 : index
    %59 = memref.load %arg1[%c14] : memref<56xf32, #tpu.memory_space<smem>>
    %60 = vector.broadcast %59 : f32 to vector<8x128xf32>
    %61 = arith.addf %58, %60 : vector<8x128xf32>
    %cst_9 = arith.constant 0.000000e+00 : f32
    %62 = vector.broadcast %cst_9 : f32 to vector<8x128xf32>
    %63 = arith.maximumf %61, %62 : vector<8x128xf32>
    %c15 = arith.constant 15 : index
    %64 = memref.load %arg1[%c15] : memref<56xf32, #tpu.memory_space<smem>>
    %65 = vector.broadcast %64 : f32 to vector<8x128xf32>
    %66 = arith.mulf %1, %65 : vector<8x128xf32>
    %c16 = arith.constant 16 : index
    %67 = memref.load %arg1[%c16] : memref<56xf32, #tpu.memory_space<smem>>
    %68 = vector.broadcast %67 : f32 to vector<8x128xf32>
    %69 = arith.mulf %3, %68 : vector<8x128xf32>
    %70 = arith.addf %66, %69 : vector<8x128xf32>
    %c17 = arith.constant 17 : index
    %71 = memref.load %arg1[%c17] : memref<56xf32, #tpu.memory_space<smem>>
    %72 = vector.broadcast %71 : f32 to vector<8x128xf32>
    %73 = arith.addf %70, %72 : vector<8x128xf32>
    %cst_10 = arith.constant 0.000000e+00 : f32
    %74 = vector.broadcast %cst_10 : f32 to vector<8x128xf32>
    %75 = arith.maximumf %73, %74 : vector<8x128xf32>
    %c18 = arith.constant 18 : index
    %76 = memref.load %arg1[%c18] : memref<56xf32, #tpu.memory_space<smem>>
    %77 = vector.broadcast %76 : f32 to vector<8x128xf32>
    %78 = arith.mulf %15, %77 : vector<8x128xf32>
    %c19 = arith.constant 19 : index
    %79 = memref.load %arg1[%c19] : memref<56xf32, #tpu.memory_space<smem>>
    %80 = vector.broadcast %79 : f32 to vector<8x128xf32>
    %81 = arith.mulf %27, %80 : vector<8x128xf32>
    %82 = arith.addf %78, %81 : vector<8x128xf32>
    %c20 = arith.constant 20 : index
    %83 = memref.load %arg1[%c20] : memref<56xf32, #tpu.memory_space<smem>>
    %84 = vector.broadcast %83 : f32 to vector<8x128xf32>
    %85 = arith.mulf %39, %84 : vector<8x128xf32>
    %86 = arith.addf %82, %85 : vector<8x128xf32>
    %c21 = arith.constant 21 : index
    %87 = memref.load %arg1[%c21] : memref<56xf32, #tpu.memory_space<smem>>
    %88 = vector.broadcast %87 : f32 to vector<8x128xf32>
    %89 = arith.mulf %51, %88 : vector<8x128xf32>
    %90 = arith.addf %86, %89 : vector<8x128xf32>
    %c22 = arith.constant 22 : index
    %91 = memref.load %arg1[%c22] : memref<56xf32, #tpu.memory_space<smem>>
    %92 = vector.broadcast %91 : f32 to vector<8x128xf32>
    %93 = arith.mulf %63, %92 : vector<8x128xf32>
    %94 = arith.addf %90, %93 : vector<8x128xf32>
    %c23 = arith.constant 23 : index
    %95 = memref.load %arg1[%c23] : memref<56xf32, #tpu.memory_space<smem>>
    %96 = vector.broadcast %95 : f32 to vector<8x128xf32>
    %97 = arith.mulf %75, %96 : vector<8x128xf32>
    %98 = arith.addf %94, %97 : vector<8x128xf32>
    %c24 = arith.constant 24 : index
    %99 = memref.load %arg1[%c24] : memref<56xf32, #tpu.memory_space<smem>>
    %100 = vector.broadcast %99 : f32 to vector<8x128xf32>
    %101 = arith.addf %98, %100 : vector<8x128xf32>
    %cst_11 = arith.constant 0.000000e+00 : f32
    %102 = vector.broadcast %cst_11 : f32 to vector<8x128xf32>
    %103 = arith.maximumf %101, %102 : vector<8x128xf32>
    %c25 = arith.constant 25 : index
    %104 = memref.load %arg1[%c25] : memref<56xf32, #tpu.memory_space<smem>>
    %105 = vector.broadcast %104 : f32 to vector<8x128xf32>
    %106 = arith.mulf %15, %105 : vector<8x128xf32>
    %c26 = arith.constant 26 : index
    %107 = memref.load %arg1[%c26] : memref<56xf32, #tpu.memory_space<smem>>
    %108 = vector.broadcast %107 : f32 to vector<8x128xf32>
    %109 = arith.mulf %27, %108 : vector<8x128xf32>
    %110 = arith.addf %106, %109 : vector<8x128xf32>
    %c27 = arith.constant 27 : index
    %111 = memref.load %arg1[%c27] : memref<56xf32, #tpu.memory_space<smem>>
    %112 = vector.broadcast %111 : f32 to vector<8x128xf32>
    %113 = arith.mulf %39, %112 : vector<8x128xf32>
    %114 = arith.addf %110, %113 : vector<8x128xf32>
    %c28 = arith.constant 28 : index
    %115 = memref.load %arg1[%c28] : memref<56xf32, #tpu.memory_space<smem>>
    %116 = vector.broadcast %115 : f32 to vector<8x128xf32>
    %117 = arith.mulf %51, %116 : vector<8x128xf32>
    %118 = arith.addf %114, %117 : vector<8x128xf32>
    %c29 = arith.constant 29 : index
    %119 = memref.load %arg1[%c29] : memref<56xf32, #tpu.memory_space<smem>>
    %120 = vector.broadcast %119 : f32 to vector<8x128xf32>
    %121 = arith.mulf %63, %120 : vector<8x128xf32>
    %122 = arith.addf %118, %121 : vector<8x128xf32>
    %c30 = arith.constant 30 : index
    %123 = memref.load %arg1[%c30] : memref<56xf32, #tpu.memory_space<smem>>
    %124 = vector.broadcast %123 : f32 to vector<8x128xf32>
    %125 = arith.mulf %75, %124 : vector<8x128xf32>
    %126 = arith.addf %122, %125 : vector<8x128xf32>
    %c31 = arith.constant 31 : index
    %127 = memref.load %arg1[%c31] : memref<56xf32, #tpu.memory_space<smem>>
    %128 = vector.broadcast %127 : f32 to vector<8x128xf32>
    %129 = arith.addf %126, %128 : vector<8x128xf32>
    %cst_12 = arith.constant 0.000000e+00 : f32
    %130 = vector.broadcast %cst_12 : f32 to vector<8x128xf32>
    %131 = arith.maximumf %129, %130 : vector<8x128xf32>
    %c32 = arith.constant 32 : index
    %132 = memref.load %arg1[%c32] : memref<56xf32, #tpu.memory_space<smem>>
    %133 = vector.broadcast %132 : f32 to vector<8x128xf32>
    %134 = arith.mulf %15, %133 : vector<8x128xf32>
    %c33 = arith.constant 33 : index
    %135 = memref.load %arg1[%c33] : memref<56xf32, #tpu.memory_space<smem>>
    %136 = vector.broadcast %135 : f32 to vector<8x128xf32>
    %137 = arith.mulf %27, %136 : vector<8x128xf32>
    %138 = arith.addf %134, %137 : vector<8x128xf32>
    %c34 = arith.constant 34 : index
    %139 = memref.load %arg1[%c34] : memref<56xf32, #tpu.memory_space<smem>>
    %140 = vector.broadcast %139 : f32 to vector<8x128xf32>
    %141 = arith.mulf %39, %140 : vector<8x128xf32>
    %142 = arith.addf %138, %141 : vector<8x128xf32>
    %c35 = arith.constant 35 : index
    %143 = memref.load %arg1[%c35] : memref<56xf32, #tpu.memory_space<smem>>
    %144 = vector.broadcast %143 : f32 to vector<8x128xf32>
    %145 = arith.mulf %51, %144 : vector<8x128xf32>
    %146 = arith.addf %142, %145 : vector<8x128xf32>
    %c36 = arith.constant 36 : index
    %147 = memref.load %arg1[%c36] : memref<56xf32, #tpu.memory_space<smem>>
    %148 = vector.broadcast %147 : f32 to vector<8x128xf32>
    %149 = arith.mulf %63, %148 : vector<8x128xf32>
    %150 = arith.addf %146, %149 : vector<8x128xf32>
    %c37 = arith.constant 37 : index
    %151 = memref.load %arg1[%c37] : memref<56xf32, #tpu.memory_space<smem>>
    %152 = vector.broadcast %151 : f32 to vector<8x128xf32>
    %153 = arith.mulf %75, %152 : vector<8x128xf32>
    %154 = arith.addf %150, %153 : vector<8x128xf32>
    %c38 = arith.constant 38 : index
    %155 = memref.load %arg1[%c38] : memref<56xf32, #tpu.memory_space<smem>>
    %156 = vector.broadcast %155 : f32 to vector<8x128xf32>
    %157 = arith.addf %154, %156 : vector<8x128xf32>
    %cst_13 = arith.constant 0.000000e+00 : f32
    %158 = vector.broadcast %cst_13 : f32 to vector<8x128xf32>
    %159 = arith.maximumf %157, %158 : vector<8x128xf32>
    %c39 = arith.constant 39 : index
    %160 = memref.load %arg1[%c39] : memref<56xf32, #tpu.memory_space<smem>>
    %161 = vector.broadcast %160 : f32 to vector<8x128xf32>
    %162 = arith.mulf %15, %161 : vector<8x128xf32>
    %c40 = arith.constant 40 : index
    %163 = memref.load %arg1[%c40] : memref<56xf32, #tpu.memory_space<smem>>
    %164 = vector.broadcast %163 : f32 to vector<8x128xf32>
    %165 = arith.mulf %27, %164 : vector<8x128xf32>
    %166 = arith.addf %162, %165 : vector<8x128xf32>
    %c41 = arith.constant 41 : index
    %167 = memref.load %arg1[%c41] : memref<56xf32, #tpu.memory_space<smem>>
    %168 = vector.broadcast %167 : f32 to vector<8x128xf32>
    %169 = arith.mulf %39, %168 : vector<8x128xf32>
    %170 = arith.addf %166, %169 : vector<8x128xf32>
    %c42 = arith.constant 42 : index
    %171 = memref.load %arg1[%c42] : memref<56xf32, #tpu.memory_space<smem>>
    %172 = vector.broadcast %171 : f32 to vector<8x128xf32>
    %173 = arith.mulf %51, %172 : vector<8x128xf32>
    %174 = arith.addf %170, %173 : vector<8x128xf32>
    %c43 = arith.constant 43 : index
    %175 = memref.load %arg1[%c43] : memref<56xf32, #tpu.memory_space<smem>>
    %176 = vector.broadcast %175 : f32 to vector<8x128xf32>
    %177 = arith.mulf %63, %176 : vector<8x128xf32>
    %178 = arith.addf %174, %177 : vector<8x128xf32>
    %c44 = arith.constant 44 : index
    %179 = memref.load %arg1[%c44] : memref<56xf32, #tpu.memory_space<smem>>
    %180 = vector.broadcast %179 : f32 to vector<8x128xf32>
    %181 = arith.mulf %75, %180 : vector<8x128xf32>
    %182 = arith.addf %178, %181 : vector<8x128xf32>
    %c45 = arith.constant 45 : index
    %183 = memref.load %arg1[%c45] : memref<56xf32, #tpu.memory_space<smem>>
    %184 = vector.broadcast %183 : f32 to vector<8x128xf32>
    %185 = arith.addf %182, %184 : vector<8x128xf32>
    %cst_14 = arith.constant 0.000000e+00 : f32
    %186 = vector.broadcast %cst_14 : f32 to vector<8x128xf32>
    %187 = arith.maximumf %185, %186 : vector<8x128xf32>
    %c46 = arith.constant 46 : index
    %188 = memref.load %arg1[%c46] : memref<56xf32, #tpu.memory_space<smem>>
    %189 = vector.broadcast %188 : f32 to vector<8x128xf32>
    %190 = arith.mulf %103, %189 : vector<8x128xf32>
    %c47 = arith.constant 47 : index
    %191 = memref.load %arg1[%c47] : memref<56xf32, #tpu.memory_space<smem>>
    %192 = vector.broadcast %191 : f32 to vector<8x128xf32>
    %193 = arith.mulf %131, %192 : vector<8x128xf32>
    %194 = arith.addf %190, %193 : vector<8x128xf32>
    %c48 = arith.constant 48 : index
    %195 = memref.load %arg1[%c48] : memref<56xf32, #tpu.memory_space<smem>>
    %196 = vector.broadcast %195 : f32 to vector<8x128xf32>
    %197 = arith.mulf %159, %196 : vector<8x128xf32>
    %198 = arith.addf %194, %197 : vector<8x128xf32>
    %c49 = arith.constant 49 : index
    %199 = memref.load %arg1[%c49] : memref<56xf32, #tpu.memory_space<smem>>
    %200 = vector.broadcast %199 : f32 to vector<8x128xf32>
    %201 = arith.mulf %187, %200 : vector<8x128xf32>
    %202 = arith.addf %198, %201 : vector<8x128xf32>
    %c50 = arith.constant 50 : index
    %203 = memref.load %arg1[%c50] : memref<56xf32, #tpu.memory_space<smem>>
    %204 = vector.broadcast %203 : f32 to vector<8x128xf32>
    %205 = arith.addf %202, %204 : vector<8x128xf32>
    %cst_15 = arith.constant 0.000000e+00 : f32
    %206 = vector.broadcast %cst_15 : f32 to vector<8x128xf32>
    %207 = arith.maximumf %205, %206 : vector<8x128xf32>
    %c51 = arith.constant 51 : index
    %208 = memref.load %arg1[%c51] : memref<56xf32, #tpu.memory_space<smem>>
    %209 = vector.broadcast %208 : f32 to vector<8x128xf32>
    %210 = arith.mulf %103, %209 : vector<8x128xf32>
    %c52 = arith.constant 52 : index
    %211 = memref.load %arg1[%c52] : memref<56xf32, #tpu.memory_space<smem>>
    %212 = vector.broadcast %211 : f32 to vector<8x128xf32>
    %213 = arith.mulf %131, %212 : vector<8x128xf32>
    %214 = arith.addf %210, %213 : vector<8x128xf32>
    %c53 = arith.constant 53 : index
    %215 = memref.load %arg1[%c53] : memref<56xf32, #tpu.memory_space<smem>>
    %216 = vector.broadcast %215 : f32 to vector<8x128xf32>
    %217 = arith.mulf %159, %216 : vector<8x128xf32>
    %218 = arith.addf %214, %217 : vector<8x128xf32>
    %c54 = arith.constant 54 : index
    %219 = memref.load %arg1[%c54] : memref<56xf32, #tpu.memory_space<smem>>
    %220 = vector.broadcast %219 : f32 to vector<8x128xf32>
    %221 = arith.mulf %187, %220 : vector<8x128xf32>
    %222 = arith.addf %218, %221 : vector<8x128xf32>
    %c55 = arith.constant 55 : index
    %223 = memref.load %arg1[%c55] : memref<56xf32, #tpu.memory_space<smem>>
    %224 = vector.broadcast %223 : f32 to vector<8x128xf32>
    %225 = arith.addf %222, %224 : vector<8x128xf32>
    %cst_16 = arith.constant 0.000000e+00 : f32
    %226 = vector.broadcast %cst_16 : f32 to vector<8x128xf32>
    %227 = arith.maximumf %225, %226 : vector<8x128xf32>
    %c0_17 = arith.constant 0 : index
    %c0_18 = arith.constant 0 : index
    %c0_19 = arith.constant 0 : index
    %228 = vector.load %arg3[%c0_17, %c0_18, %c0_19] : memref<2x8x128xf32, #tpu.memory_space<vmem>>, vector<1x8x128xf32>
    %229 = vector.shape_cast %228 : vector<1x8x128xf32> to vector<8x128xf32>
    %230 = vector.shape_cast %207 : vector<8x128xf32> to vector<1x8x128xf32>
    tpu.vector_store %arg3[%c0_17, %c0_18, %c0_19], %230 {strides = array<i32>} : memref<2x8x128xf32, #tpu.memory_space<vmem>>, vector<1x8x128xf32>,
    %c1_20 = arith.constant 1 : index
    %c0_21 = arith.constant 0 : index
    %c0_22 = arith.constant 0 : index
    %231 = vector.load %arg3[%c1_20, %c0_21, %c0_22] : memref<2x8x128xf32, #tpu.memory_space<vmem>>, vector<1x8x128xf32>
    %232 = vector.shape_cast %231 : vector<1x8x128xf32> to vector<8x128xf32>
    %233 = vector.shape_cast %227 : vector<8x128xf32> to vector<1x8x128xf32>
    tpu.vector_store %arg3[%c1_20, %c0_21, %c0_22], %233 {strides = array<i32>} : memref<2x8x128xf32, #tpu.memory_space<vmem>>, vector<1x8x128xf32>,
    return
  }
  func.func @transform_0(%arg0: i32) -> i32 {
    %c0_i32 = arith.constant 0 : i32
    %c0_i32_0 = arith.constant 0 : i32
    return %c0_i32 : i32
  }
  func.func @transform_1(%arg0: i32) -> (i32, i32, i32) {
    %c0_i32 = arith.constant 0 : i32
    %c0_i32_0 = arith.constant 0 : i32
    %c0_i32_1 = arith.constant 0 : i32
    return %c0_i32, %arg0, %c0_i32_0 : i32, i32, i32
  }
  func.func @transform_2(%arg0: i32) -> (i32, i32, i32) {
    %c0_i32 = arith.constant 0 : i32
    %c0_i32_0 = arith.constant 0 : i32
    %c0_i32_1 = arith.constant 0 : i32
    return %c0_i32, %arg0, %c0_i32_0 : i32, i32, i32
  }
}

</mosaic_0001>

<llo_original>
// kernel: net_forward.1
$region0: #{net_forward.1}
  #allocation0 [shape = 'u32[]', space=smem, size = 0x4, offset = 0x4, fixed_abs, tag = 'smem constant byte address 0x4 - core index']
  #allocation1 [shape = 'u32[72,128]{1,0:T(1,128)}', space=vmem, size = 0x9000, scoped, tag = 'internal scratch']
  %s0 = inlined_call_operand.vmem [shape: f32[56], index: 0, kind: input, shape index: {}]
  %s1 = inlined_call_operand.vmem [shape: f32[2,8,128], index: 1, kind: input, shape index: {}]
  %s2 = inlined_call_operand.vmem [shape: f32[2,8,128], index: 2, kind: output, shape index: {}]
  %s3 = sld [smem:[#allocation0]]
  $region22: #{net_forward.1} parent=0
    _
  %s5 = ssub.s32 1, %s3
  %s6 = scalar_select 0, %s5, %s3
  $region1: #{net_forward.1} parent=0
    #allocation2 [shape = 'u8[512]{0}', space=smem, size = 0x200, scoped, tag = 'input window, operand 0, single buffered']
    #allocation3 [shape = 's32[1]{0}', space=sflag, size = 0x4, scoped, tag = 'scoped memory for net_forward.1']
    %7 = vsyncpa [#allocation3], 0
    // Predicated region
    $region2: #{net_forward.1} parent=1 // pred_check
      _
    $region3: #{net_forward.1} parent=1 // pred_check_branch
      %9 = sbr.rel (0) target = $region5
    $region4: #{net_forward.1} parent=1 // pred_region
      %11 = vsyncadd [#allocation3], 0
      %s13 = sshll.u32 %s0, 4
      %s14 = int_to_ptr.vmem [resolvable:$true] %s13
      %16 = dma.vmem_to_smem %s14, 16, [#allocation2], [#allocation3]
    $region5: #{net_forward.1} parent=1 // pred_fallthru
      _
    // Predicated region
    $region6: #{net_forward.1} parent=1 // pred_check
      _
    $region7: #{net_forward.1} parent=1 // pred_check_branch
      %18 = sbr.rel (0) target = $region9
    $region8: #{net_forward.1} parent=1 // pred_region
      _
    $region9: #{net_forward.1} parent=1 // pred_fallthru
      _
    // Predicated region
    $region10: #{net_forward.1} parent=1 // pred_check
      _
    $region11: #{net_forward.1} parent=1 // pred_check_branch
      %20 = sbr.rel (0) target = $region13
    $region12: #{net_forward.1} parent=1 // pred_region
      %22 = dma.done [#allocation3], 16
    $region13: #{net_forward.1} parent=1 // pred_fallthru
      _
    %23 = sfence
    %v24 = vld [vmem:[%s1] sm:$0xff]
    %s25 = scalar_lea.vmem %s1, 8
    %v26 = vld [vmem:[%s25] sm:$0xff]
    %s27 = sld [smem:[#allocation2]]
    %v28 = vstv %s27
    %v29 = vmul.f32 %v24, %v28
    %s30 = sld [smem:[#allocation2 + $0x1]]
    %v31 = vstv %s30
    %v32 = vmul.f32 %v26, %v31
    %v33 = vadd.f32 %v29, %v32
    %s34 = sld [smem:[#allocation2 + $0x2]]
    %v35 = vstv %s34
    %v36 = vadd.f32 %v33, %v35
    %v37 = vmax.f32 %v36, 0.0
    %s38 = sld [smem:[#allocation2 + $0x3]]
    %v39 = vstv %s38
    %v40 = vmul.f32 %v24, %v39
    %s41 = sld [smem:[#allocation2 + $0x4]]
    %v42 = vstv %s41
    %v43 = vmul.f32 %v26, %v42
    %v44 = vadd.f32 %v40, %v43
    %s45 = sld [smem:[#allocation2 + $0x5]]
    %v46 = vstv %s45
    %v47 = vadd.f32 %v44, %v46
    %v48 = vmax.f32 %v47, 0.0
    %s49 = sld [smem:[#allocation2 + $0x6]]
    %v50 = vstv %s49
    %v51 = vmul.f32 %v24, %v50
    %s52 = sld [smem:[#allocation2 + $0x7]]
    %v53 = vstv %s52
    %v54 = vmul.f32 %v26, %v53
    %v55 = vadd.f32 %v51, %v54
    %s56 = sld [smem:[#allocation2 + $0x8]]
    %v57 = vstv %s56
    %v58 = vadd.f32 %v55, %v57
    %v59 = vmax.f32 %v58, 0.0
    %s60 = sld [smem:[#allocation2 + $0x9]]
    %v61 = vstv %s60
    %v62 = vmul.f32 %v24, %v61
    %s63 = sld [smem:[#allocation2 + $0xa]]
    %v64 = vstv %s63
    %v65 = vmul.f32 %v26, %v64
    %v66 = vadd.f32 %v62, %v65
    %s67 = sld [smem:[#allocation2 + $0xb]]
    %v68 = vstv %s67
    %v69 = vadd.f32 %v66, %v68
    %v70 = vmax.f32 %v69, 0.0
    %s71 = sld [smem:[#allocation2 + $0xc]]
    %v72 = vstv %s71
    %v73 = vmul.f32 %v24, %v72
    %s74 = sld [smem:[#allocation2 + $0xd]]
    %v75 = vstv %s74
    %v76 = vmul.f32 %v26, %v75
    %v77 = vadd.f32 %v73, %v76
    %s78 = sld [smem:[#allocation2 + $0xe]]
    %v79 = vstv %s78
    %v80 = vadd.f32 %v77, %v79
    %v81 = vmax.f32 %v80, 0.0
    %s82 = sld [smem:[#allocation2 + $0xf]]
    %v83 = vstv %s82
    %v84 = vmul.f32 %v24, %v83
    %s85 = sld [smem:[#allocation2 + $0x10]]
    %v86 = vstv %s85
    %v87 = vmul.f32 %v26, %v86
    %v88 = vadd.f32 %v84, %v87
    %s89 = sld [smem:[#allocation2 + $0x11]]
    %v90 = vstv %s89
    %v91 = vadd.f32 %v88, %v90
    %v92 = vmax.f32 %v91, 0.0
    %s93 = sld [smem:[#allocation2 + $0x12]]
    %v94 = vstv %s93
    %v95 = vmul.f32 %v37, %v94
    %s96 = sld [smem:[#allocation2 + $0x13]]
    %v97 = vstv %s96
    %v98 = vmul.f32 %v48, %v97
    %v99 = vadd.f32 %v95, %v98
    %s100 = sld [smem:[#allocation2 + $0x14]]
    %v101 = vstv %s100
    %v102 = vmul.f32 %v59, %v101
    %v103 = vadd.f32 %v99, %v102
    %s104 = sld [smem:[#allocation2 + $0x15]]
    %v105 = vstv %s104
    %v106 = vmul.f32 %v70, %v105
    %v107 = vadd.f32 %v103, %v106
    %s108 = sld [smem:[#allocation2 + $0x16]]
    %v109 = vstv %s108
    %v110 = vmul.f32 %v81, %v109
    %v111 = vadd.f32 %v107, %v110
    %s112 = sld [smem:[#allocation2 + $0x17]]
    %v113 = vstv %s112
    %v114 = vmul.f32 %v92, %v113
    %v115 = vadd.f32 %v111, %v114
    %s116 = sld [smem:[#allocation2 + $0x18]]
    %v117 = vstv %s116
    %v118 = vadd.f32 %v115, %v117
    %v119 = vmax.f32 %v118, 0.0
    %s120 = sld [smem:[#allocation2 + $0x19]]
    %v121 = vstv %s120
    %v122 = vmul.f32 %v37, %v121
    %s123 = sld [smem:[#allocation2 + $0x1a]]
    %v124 = vstv %s123
    %v125 = vmul.f32 %v48, %v124
    %v126 = vadd.f32 %v122, %v125
    %s127 = sld [smem:[#allocation2 + $0x1b]]
    %v128 = vstv %s127
    %v129 = vmul.f32 %v59, %v128
    %v130 = vadd.f32 %v126, %v129
    %s131 = sld [smem:[#allocation2 + $0x1c]]
    %v132 = vstv %s131
    %v133 = vmul.f32 %v70, %v132
    %v134 = vadd.f32 %v130, %v133
    %s135 = sld [smem:[#allocation2 + $0x1d]]
    %v136 = vstv %s135
    %v137 = vmul.f32 %v81, %v136
    %v138 = vadd.f32 %v134, %v137
    %s139 = sld [smem:[#allocation2 + $0x1e]]
    %v140 = vstv %s139
    %v141 = vmul.f32 %v92, %v140
    %v142 = vadd.f32 %v138, %v141
    %s143 = sld [smem:[#allocation2 + $0x1f]]
    %v144 = vstv %s143
    %v145 = vadd.f32 %v142, %v144
    %v146 = vmax.f32 %v145, 0.0
    %s147 = sld [smem:[#allocation2 + $0x20]]
    %v148 = vstv %s147
    %v149 = vmul.f32 %v37, %v148
    %s150 = sld [smem:[#allocation2 + $0x21]]
    %v151 = vstv %s150
    %v152 = vmul.f32 %v48, %v151
    %v153 = vadd.f32 %v149, %v152
    %s154 = sld [smem:[#allocation2 + $0x22]]
    %v155 = vstv %s154
    %v156 = vmul.f32 %v59, %v155
    %v157 = vadd.f32 %v153, %v156
    %s158 = sld [smem:[#allocation2 + $0x23]]
    %v159 = vstv %s158
    %v160 = vmul.f32 %v70, %v159
    %v161 = vadd.f32 %v157, %v160
    %s162 = sld [smem:[#allocation2 + $0x24]]
    %v163 = vstv %s162
    %v164 = vmul.f32 %v81, %v163
    %v165 = vadd.f32 %v161, %v164
    %s166 = sld [smem:[#allocation2 + $0x25]]
    %v167 = vstv %s166
    %v168 = vmul.f32 %v92, %v167
    %v169 = vadd.f32 %v165, %v168
    %s170 = sld [smem:[#allocation2 + $0x26]]
    %v171 = vstv %s170
    %v172 = vadd.f32 %v169, %v171
    %v173 = vmax.f32 %v172, 0.0
    %s174 = sld [smem:[#allocation2 + $0x27]]
    %v175 = vstv %s174
    %v176 = vmul.f32 %v37, %v175
    %s177 = sld [smem:[#allocation2 + $0x28]]
    %v178 = vstv %s177
    %v179 = vmul.f32 %v48, %v178
    %v180 = vadd.f32 %v176, %v179
    %s181 = sld [smem:[#allocation2 + $0x29]]
    %v182 = vstv %s181
    %v183 = vmul.f32 %v59, %v182
    %v184 = vadd.f32 %v180, %v183
    %s185 = sld [smem:[#allocation2 + $0x2a]]
    %v186 = vstv %s185
    %v187 = vmul.f32 %v70, %v186
    %v188 = vadd.f32 %v184, %v187
    %s189 = sld [smem:[#allocation2 + $0x2b]]
    %v190 = vstv %s189
    %v191 = vmul.f32 %v81, %v190
    %v192 = vadd.f32 %v188, %v191
    %s193 = sld [smem:[#allocation2 + $0x2c]]
    %v194 = vstv %s193
    %v195 = vmul.f32 %v92, %v194
    %v196 = vadd.f32 %v192, %v195
    %s197 = sld [smem:[#allocation2 + $0x2d]]
    %v198 = vstv %s197
    %v199 = vadd.f32 %v196, %v198
    %v200 = vmax.f32 %v199, 0.0
    %s201 = sld [smem:[#allocation2 + $0x2e]]
    %v202 = vstv %s201
    %v203 = vmul.f32 %v119, %v202
    %s204 = sld [smem:[#allocation2 + $0x2f]]
    %v205 = vstv %s204
    %v206 = vmul.f32 %v146, %v205
    %v207 = vadd.f32 %v203, %v206
    %s208 = sld [smem:[#allocation2 + $0x30]]
    %v209 = vstv %s208
    %v210 = vmul.f32 %v173, %v209
    %v211 = vadd.f32 %v207, %v210
    %s212 = sld [smem:[#allocation2 + $0x31]]
    %v213 = vstv %s212
    %v214 = vmul.f32 %v200, %v213
    %v215 = vadd.f32 %v211, %v214
    %s216 = sld [smem:[#allocation2 + $0x32]]
    %v217 = vstv %s216
    %v218 = vadd.f32 %v215, %v217
    %v219 = vmax.f32 %v218, 0.0
    %s220 = sld [smem:[#allocation2 + $0x33]]
    %v221 = vstv %s220
    %v222 = vmul.f32 %v119, %v221
    %s223 = sld [smem:[#allocation2 + $0x34]]
    %v224 = vstv %s223
    %v225 = vmul.f32 %v146, %v224
    %v226 = vadd.f32 %v222, %v225
    %s227 = sld [smem:[#allocation2 + $0x35]]
    %v228 = vstv %s227
    %v229 = vmul.f32 %v173, %v228
    %v230 = vadd.f32 %v226, %v229
    %s231 = sld [smem:[#allocation2 + $0x36]]
    %v232 = vstv %s231
    %v233 = vmul.f32 %v200, %v232
    %v234 = vadd.f32 %v230, %v233
    %s235 = sld [smem:[#allocation2 + $0x37]]
    %v236 = vstv %s235
    %v237 = vadd.f32 %v234, %v236
    %v238 = vmax.f32 %v237, 0.0
    %239 = vst [vmem:[%s2] sm:$0xff] %v219
    %s240 = scalar_lea.vmem %s2, 8
    %241 = vst [vmem:[%s240] sm:$0xff] %v238
    // Predicated region
    $region14: #{net_forward.1} parent=1 // pred_check
      _
    $region15: #{net_forward.1} parent=1 // pred_check_branch
      %243 = sbr.rel (0) target = $region17
    $region16: #{net_forward.1} parent=1 // pred_region
      _
    $region17: #{net_forward.1} parent=1 // pred_fallthru
      _
    // Predicated region
    $region18: #{net_forward.1} parent=1 // pred_check
      _
    $region19: #{net_forward.1} parent=1 // pred_check_branch
      %245 = sbr.rel (0) target = $region21
    $region20: #{net_forward.1} parent=1 // pred_region
      _
    $region21: #{net_forward.1} parent=1 // pred_fallthru
      _
    %246 = vsyncpa [#allocation3], 1

</llo_original>
